<compile_context>
chip_gen: v5e
topology: v5e:2x2
jax: 0.10.0
libtpu: 0.0.40
codegen_flags: <defaults>
</compile_context>

<pallas_src>
import functools

import jax
import jax.numpy as jnp
from jax.experimental import pallas as pl
from jax.experimental.pallas import tpu as pltpu

LANE = 128          # lane width: every feature dim is padded to this
BN_EPS = 1e-5
VEC_ROWS = 8        # sublane-aligned vector block at the end of the slab


def _make_actor_kernel(in1p: int, pad: int):
    """Fused MLP kernel for a given (8-aligned) input width / lane padding."""
    r1 = in1p            # end of W1 rows in the slab
    r2 = in1p + pad      # end of W2 rows
    r3 = in1p + 2 * pad  # end of W3 rows; vector rows start here (8-aligned)

    def kernel(state_ref, p_ref, out_ref):
        x = state_ref[...]                                   # (B, in1p)

        # Tile-aligned ref slices -- load only what each matmul needs.
        w1 = p_ref[0:r1, :]                                  # (in1p, pad)
        w2 = p_ref[r1:r2, :]                                 # (pad,  pad) zero-padded
        w3 = p_ref[r2:r3, :]                                 # (pad,  pad)
        V = p_ref[r3:r3 + VEC_ROWS, :]                       # (8, pad) -- one f32 vreg
        b1, gamma, beta, b2, b3 = (V[0:1, :], V[1:2, :], V[2:3, :],
                                   V[3:4, :], V[4:5, :])

        # fc1 + relu  (padded output columns stay exactly 0)
        h1 = jnp.dot(x, w1, preferred_element_type=jnp.float32) + b1
        h1 = jnp.maximum(h1, 0.0)

        # BatchNorm1d, training-mode batch statistics (biased variance).
        # Centered two-pass variance; gamma folded into the per-feature scale.
        inv_b = 1.0 / h1.shape[0]
        mean = jnp.sum(h1, axis=0, keepdims=True) * inv_b
        d = h1 - mean
        var = jnp.sum(d * d, axis=0, keepdims=True) * inv_b
        scale = gamma * jax.lax.rsqrt(var + BN_EPS)
        h1 = d * scale + beta                                # padded cols remain 0

        # fc2 + relu
        h2 = jnp.dot(h1, w2, preferred_element_type=jnp.float32) + b2
        h2 = jnp.maximum(h2, 0.0)

        # fc3 + tanh (actor head); lane-dense (B, 128) unmasked store
        h3 = jnp.dot(h2, w3, preferred_element_type=jnp.float32) + b3
        out_ref[...] = jnp.tanh(h3)

    return kernel


def pack_params(params, pad: int = LANE):
    """Pack the 8 parameter tensors into ONE contiguous lane-dense f32 slab.

    Layout (rows): W1 (in1p) | W2 (pad) | W3 (pad) | b1,gamma,beta,b2,b3,0,0,0 (8)
    Returns (slab, in1p).
    """
    w1, b1 = params["w1"], params["b1"]
    gamma, beta = params["gamma"], params["beta"]
    w2, b2 = params["w2"], params["b2"]
    w3, b3 = params["w3"], params["b3"]

    in1 = w1.shape[0]
    in1p = ((in1 + 7) // 8) * 8          # graceful for any state_dim
    assert max(w1.shape[1], w2.shape[0], w2.shape[1],
               w3.shape[0], w3.shape[1]) <= pad

    def pad2(a, rows, cols):
        return jnp.pad(a, ((0, rows - a.shape[0]), (0, cols - a.shape[1])))

    w1p = pad2(w1, in1p, pad)                                 # (in1p, pad)
    w2p = pad2(w2, pad, pad)                                  # (pad,  pad)
    w3p = pad2(w3, pad, pad)                                  # (pad,  pad)
    vec_rows = [b1, gamma, beta, b2, b3]
    vblock = jnp.concatenate(
        [pad2(r, 1, pad) for r in vec_rows]
        + [jnp.zeros((VEC_ROWS - len(vec_rows), pad), jnp.float32)],
        axis=0)                                               # (8, pad)
    slab = jnp.concatenate([w1p, w2p, w3p, vblock], axis=0)   # (in1p+2*pad+8, pad)
    return slab, in1p


@jax.jit
def actor_network_forward(state, pslab):
    """state: (B, 2*state_dim) f32; pslab from pack_params.

    Returns the lane-dense padded (B, 128) output; slice [:, :num_fc_last]
    at the final consumer.
    """
    B, in1 = state.shape
    pad = pslab.shape[1]
    in1p = pslab.shape[0] - 2 * pad - VEC_ROWS
    if in1 < in1p:                                            # graceful padding
        state = jnp.pad(state, ((0, 0), (0, in1p - in1)))

    kernel = _make_actor_kernel(in1p, pad)
    vmem = pl.BlockSpec(memory_space=pltpu.MemorySpace.VMEM)

    flops = 2 * B * (in1p * pad + 2 * pad * pad) + 10 * B * pad  # matmuls + BN/relu
    bytes_accessed = 4 * (B * in1p + pslab.size + B * pad)
    transcendentals = B * pad + pad                              # tanh + rsqrt

    return pl.pallas_call(
        kernel,
        out_shape=jax.ShapeDtypeStruct((B, pad), jnp.float32),
        in_specs=[vmem, vmem],
        out_specs=vmem,
        cost_estimate=pl.CostEstimate(flops=flops,
                                      transcendentals=transcendentals,
                                      bytes_accessed=bytes_accessed),
    )(state, pslab)


def init_params(key, state_dim, num_fc_1, num_fc_2, num_fc_last):
    """Deterministic synthetic parameters matching the PyTorch module's shapes.
    Weights stored as (in, out) so the kernel computes y = x @ W + b."""
    in1 = state_dim * 2
    k1, k2, k3, k4, k5, k6 = jax.random.split(key, 6)
    w1 = jax.random.normal(k1, (in1, num_fc_1), jnp.float32) * (2.0 / in1) ** 0.5
    b1 = jax.random.normal(k2, (1, num_fc_1), jnp.float32) * 0.01
    w2 = jax.random.normal(k3, (num_fc_1, num_fc_2), jnp.float32) * (2.0 / num_fc_1) ** 0.5
    b2 = jax.random.normal(k4, (1, num_fc_2), jnp.float32) * 0.01
    w3 = jax.random.uniform(k5, (num_fc_2, num_fc_last), jnp.float32, -0.003, 0.003)
    b3 = jax.random.uniform(k6, (1, num_fc_last), jnp.float32, -0.003, 0.003)
    gamma = jnp.ones((1, num_fc_1), jnp.float32)   # BatchNorm1d default affine
    beta = jnp.zeros((1, num_fc_1), jnp.float32)
    return dict(w1=w1, b1=b1, gamma=gamma, beta=beta, w2=w2, b2=b2, w3=w3, b3=b3)


def reference_forward(state, params):
    """Pure-JAX reference of the same forward pass (for correctness check)."""
    h1 = jnp.maximum(state @ params["w1"] + params["b1"], 0.0)
    mean = jnp.mean(h1, axis=0, keepdims=True)
    var = jnp.mean((h1 - mean) ** 2, axis=0, keepdims=True)
    h1 = (h1 - mean) * jax.lax.rsqrt(var + BN_EPS) * params["gamma"] + params["beta"]
    h2 = jnp.maximum(h1 @ params["w2"] + params["b2"], 0.0)
    return jnp.tanh(h2 @ params["w3"] + params["b3"])


if __name__ == "__main__":
    state_dim, action_dim = 8, 4
    num_fc_1, num_fc_2, num_fc_last = 32, 32, action_dim
    batch = 8   # BN uses whole-batch stats, so the batch stays in one program

    key = jax.random.PRNGKey(0)
    k_params, k_state = jax.random.split(key)
    params = init_params(k_params, state_dim, num_fc_1, num_fc_2, num_fc_last)
    state = jax.random.normal(k_state, (batch, state_dim * 2), jnp.float32)

    pslab, _ = pack_params(params)               # packed once, reused across calls
    out_padded = actor_network_forward(state, pslab)
    jax.block_until_ready(out_padded)

    # Final consumer: slice the padded lane-dense output exactly once.
    out = out_padded[:, :num_fc_last]
    assert out.shape == (batch, num_fc_last)
    assert bool(jnp.all(jnp.abs(out) <= 1.0))    # tanh output range
    ref = reference_forward(state, params)
    assert bool(jnp.allclose(out, ref, atol=1e-5, rtol=1e-5))
    print("KERNEL_OK")
</pallas_src>

<mosaic_0001>
module attributes {stable_mosaic.version = 11 : i64} {
  func.func @kernel(%arg0: memref<8x16xf32, #tpu.memory_space<vmem>>, %arg1: memref<280x128xf32, #tpu.memory_space<vmem>>, %arg2: memref<8x128xf32, #tpu.memory_space<vmem>>) attributes {dimension_semantics = [], scalar_prefetch = 0 : i64, scratch_operands = 0 : i64, tpu.core_type = #tpu.core_type<tc>} {
    %c0 = arith.constant 0 : index
    %c0_0 = arith.constant 0 : index
    %0 = vector.load %arg0[%c0, %c0_0] : memref<8x16xf32, #tpu.memory_space<vmem>>, vector<8x16xf32>
    %c0_1 = arith.constant 0 : index
    %c0_2 = arith.constant 0 : index
    %1 = vector.load %arg1[%c0_1, %c0_2] : memref<280x128xf32, #tpu.memory_space<vmem>>, vector<16x128xf32>
    %c16 = arith.constant 16 : index
    %c0_3 = arith.constant 0 : index
    %2 = vector.load %arg1[%c16, %c0_3] : memref<280x128xf32, #tpu.memory_space<vmem>>, vector<128x128xf32>
    %c144 = arith.constant 144 : index
    %c0_4 = arith.constant 0 : index
    %3 = vector.load %arg1[%c144, %c0_4] : memref<280x128xf32, #tpu.memory_space<vmem>>, vector<128x128xf32>
    %c272 = arith.constant 272 : index
    %c0_5 = arith.constant 0 : index
    %4 = vector.load %arg1[%c272, %c0_5] : memref<280x128xf32, #tpu.memory_space<vmem>>, vector<8x128xf32>
    %5 = vector.extract_strided_slice %4 {offsets = [0, 0], sizes = [1, 128], strides = [1, 1]} : vector<8x128xf32> to vector<1x128xf32>
    %6 = vector.extract_strided_slice %4 {offsets = [1, 0], sizes = [1, 128], strides = [1, 1]} : vector<8x128xf32> to vector<1x128xf32>
    %7 = vector.extract_strided_slice %4 {offsets = [2, 0], sizes = [1, 128], strides = [1, 1]} : vector<8x128xf32> to vector<1x128xf32>
    %8 = vector.extract_strided_slice %4 {offsets = [3, 0], sizes = [1, 128], strides = [1, 1]} : vector<8x128xf32> to vector<1x128xf32>
    %9 = vector.extract_strided_slice %4 {offsets = [4, 0], sizes = [1, 128], strides = [1, 1]} : vector<8x128xf32> to vector<1x128xf32>
    %cst = arith.constant dense<0.000000e+00> : vector<8x128xf32>
    %10 = tpu.matmul %0, %1, %cst {dimension_numbers = #tpu.dot_dimension_numbers<[1], [0], [0], [1], [0, 0, 1, 1], [], []>} : vector<8x16xf32>, vector<16x128xf32>, vector<8x128xf32> -> vector<8x128xf32>
    %11 = vector.broadcast %5 : vector<1x128xf32> to vector<8x128xf32>
    %12 = arith.addf %10, %11 : vector<8x128xf32>
    %cst_6 = arith.constant 0.000000e+00 : f32
    %13 = vector.broadcast %cst_6 : f32 to vector<8x128xf32>
    %14 = arith.maximumf %12, %13 : vector<8x128xf32>
    %cst_7 = arith.constant dense<0.000000e+00> : vector<128xf32>
    %15 = vector.multi_reduction <add>, %14, %cst_7 [0] : vector<8x128xf32> to vector<128xf32>
    %16 = vector.shape_cast %15 : vector<128xf32> to vector<1x128xf32>
    %cst_8 = arith.constant 1.250000e-01 : f32
    %17 = vector.broadcast %cst_8 : f32 to vector<1x128xf32>
    %18 = arith.mulf %16, %17 : vector<1x128xf32>
    %19 = vector.broadcast %18 : vector<1x128xf32> to vector<8x128xf32>
    %20 = arith.subf %14, %19 : vector<8x128xf32>
    %21 = arith.mulf %20, %20 : vector<8x128xf32>
    %cst_9 = arith.constant dense<0.000000e+00> : vector<128xf32>
    %22 = vector.multi_reduction <add>, %21, %cst_9 [0] : vector<8x128xf32> to vector<128xf32>
    %23 = vector.shape_cast %22 : vector<128xf32> to vector<1x128xf32>
    %cst_10 = arith.constant 1.250000e-01 : f32
    %24 = vector.broadcast %cst_10 : f32 to vector<1x128xf32>
    %25 = arith.mulf %23, %24 : vector<1x128xf32>
    %cst_11 = arith.constant 9.99999974E-6 : f32
    %26 = vector.broadcast %cst_11 : f32 to vector<1x128xf32>
    %27 = arith.addf %25, %26 : vector<1x128xf32>
    %28 = math.rsqrt %27 : vector<1x128xf32>
    %29 = arith.mulf %6, %28 : vector<1x128xf32>
    %30 = vector.broadcast %29 : vector<1x128xf32> to vector<8x128xf32>
    %31 = arith.mulf %20, %30 : vector<8x128xf32>
    %32 = vector.broadcast %7 : vector<1x128xf32> to vector<8x128xf32>
    %33 = arith.addf %31, %32 : vector<8x128xf32>
    %cst_12 = arith.constant dense<0.000000e+00> : vector<8x128xf32>
    %34 = tpu.matmul %33, %2, %cst_12 {dimension_numbers = #tpu.dot_dimension_numbers<[1], [0], [0], [1], [0, 0, 1, 1], [], []>} : vector<8x128xf32>, vector<128x128xf32>, vector<8x128xf32> -> vector<8x128xf32>
    %35 = vector.broadcast %8 : vector<1x128xf32> to vector<8x128xf32>
    %36 = arith.addf %34, %35 : vector<8x128xf32>
    %cst_13 = arith.constant 0.000000e+00 : f32
    %37 = vector.broadcast %cst_13 : f32 to vector<8x128xf32>
    %38 = arith.maximumf %36, %37 : vector<8x128xf32>
    %cst_14 = arith.constant dense<0.000000e+00> : vector<8x128xf32>
    %39 = tpu.matmul %38, %3, %cst_14 {dimension_numbers = #tpu.dot_dimension_numbers<[1], [0], [0], [1], [0, 0, 1, 1], [], []>} : vector<8x128xf32>, vector<128x128xf32>, vector<8x128xf32> -> vector<8x128xf32>
    %40 = vector.broadcast %9 : vector<1x128xf32> to vector<8x128xf32>
    %41 = arith.addf %39, %40 : vector<8x128xf32>
    %42 = math.tanh %41 : vector<8x128xf32>
    %c0_15 = arith.constant 0 : index
    %c0_16 = arith.constant 0 : index
    %43 = vector.load %arg2[%c0_15, %c0_16] : memref<8x128xf32, #tpu.memory_space<vmem>>, vector<8x128xf32>
    tpu.vector_store %arg2[%c0_15, %c0_16], %42 {strides = array<i32>} : memref<8x128xf32, #tpu.memory_space<vmem>>, vector<8x128xf32>,
    return
  }
}

</mosaic_0001>

<llo_original>
// kernel: actor_network_forward.1
$region0: #{actor_network_forward.1}
  #allocation0 [shape = 'u32[]', space=smem, size = 0x4, offset = 0x4, fixed_abs, tag = 'smem constant byte address 0x4 - core index']
  #allocation1 [shape = 'u32[72,128]{1,0:T(1,128)}', space=vmem, size = 0x9000, scoped, tag = 'internal scratch']
  %s0 = inlined_call_operand.hbm [shape: f32[8,16], index: 0, kind: input, shape index: {}]
  %s1 = inlined_call_operand.hbm [shape: f32[280,128], index: 1, kind: input, shape index: {}]
  %s2 = inlined_call_operand.hbm [shape: f32[8,128], index: 2, kind: output, shape index: {}]
  %s3 = sld [smem:[#allocation0]]
  $region26: #{actor_network_forward.1} parent=0
    _
  %s5 = ssub.s32 1, %s3
  %s6 = scalar_select 0, %s5, %s3
  $region1: #{actor_network_forward.1} parent=0
    #allocation2 [shape = 'u8[4096]{0}', space=vmem, size = 0x1000, scoped, tag = 'input window, operand 0, single buffered']
    #allocation3 [shape = 's32[1]{0}', space=sflag, size = 0x4, scoped, tag = 'scoped memory for actor_network_forward.1']
    #allocation4 [shape = 's32[1]{0}', space=sflag, size = 0x4, scoped, tag = 'scoped memory for actor_network_forward.1']
    #allocation5 [shape = 'u8[143360]{0}', space=vmem, size = 0x23000, scoped, tag = 'input window, operand 1, single buffered']
    #allocation6 [shape = 's32[1]{0}', space=sflag, size = 0x4, scoped, tag = 'scoped memory for actor_network_forward.1']
    #allocation7 [shape = 'u8[4096]{0}', space=vmem, size = 0x1000, scoped, tag = 'output window, operand 0, single buffered']
    %7 = vsyncpa [#allocation3], 0
    %8 = vsyncpa [#allocation6], 0
    %9 = vsyncpa [#allocation4], 0
    // Predicated region
    $region2: #{actor_network_forward.1} parent=1 // pred_check
      _
    $region3: #{actor_network_forward.1} parent=1 // pred_check_branch
      %11 = sbr.rel (0) target = $region5
    $region4: #{actor_network_forward.1} parent=1 // pred_region
      %13 = vsyncadd [#allocation3], 0
      %s15 = sshll.u32 %s0, 4
      %s16 = int_to_ptr.hbm [resolvable:$true] %s15
      %s17 = sshll.u32 [#allocation2], 4
      %s18 = int_to_ptr.vmem [resolvable:$true] %s17
      %20 = dma.hbm_to_vmem [thread:$0]  %s16, 128, %s18, [#allocation3]
    $region5: #{actor_network_forward.1} parent=1 // pred_fallthru
      _
    // Predicated region
    $region6: #{actor_network_forward.1} parent=1 // pred_check
      _
    $region7: #{actor_network_forward.1} parent=1 // pred_check_branch
      %22 = sbr.rel (0) target = $region9
    $region8: #{actor_network_forward.1} parent=1 // pred_region
      %24 = vsyncadd [#allocation6], 0
      %s25 = sshll.u32 %s1, 4
      %s26 = int_to_ptr.hbm [resolvable:$true] %s25
      %s27 = sshll.u32 [#allocation5], 4
      %s28 = int_to_ptr.vmem [resolvable:$true] %s27
      %33 = dma.hbm_to_vmem [thread:$0]  %s26, 4480, %s28, [#allocation6], 128, 128, 8
    $region9: #{actor_network_forward.1} parent=1 // pred_fallthru
      _
    // Predicated region
    $region10: #{actor_network_forward.1} parent=1 // pred_check
      _
    $region11: #{actor_network_forward.1} parent=1 // pred_check_branch
      %35 = sbr.rel (0) target = $region13
    $region12: #{actor_network_forward.1} parent=1 // pred_region
      %37 = dma.done [#allocation3], 128
    $region13: #{actor_network_forward.1} parent=1 // pred_fallthru
      _
    // Predicated region
    $region14: #{actor_network_forward.1} parent=1 // pred_check
      _
    $region15: #{actor_network_forward.1} parent=1 // pred_check_branch
      %39 = sbr.rel (0) target = $region17
    $region16: #{actor_network_forward.1} parent=1 // pred_region
      %41 = dma.done [#allocation6], 4480
    $region17: #{actor_network_forward.1} parent=1 // pred_fallthru
      _
    %v42 = vld [vmem:[#allocation2] sm:$0xff]
    %v43 = vld [vmem:[#allocation5] sm:$0xff]
    %v44 = vld [vmem:[#allocation5 + $0x8] sm:$0xff]
    %v45 = vld [vmem:[#allocation5 + $0x10] sm:$0xff]
    %v46 = vld [vmem:[#allocation5 + $0x18] sm:$0xff]
    %v47 = vld [vmem:[#allocation5 + $0x20] sm:$0xff]
    %v48 = vld [vmem:[#allocation5 + $0x28] sm:$0xff]
    %v49 = vld [vmem:[#allocation5 + $0x30] sm:$0xff]
    %v50 = vld [vmem:[#allocation5 + $0x38] sm:$0xff]
    %v51 = vld [vmem:[#allocation5 + $0x40] sm:$0xff]
    %v52 = vld [vmem:[#allocation5 + $0x48] sm:$0xff]
    %v53 = vld [vmem:[#allocation5 + $0x50] sm:$0xff]
    %v54 = vld [vmem:[#allocation5 + $0x58] sm:$0xff]
    %v55 = vld [vmem:[#allocation5 + $0x60] sm:$0xff]
    %v56 = vld [vmem:[#allocation5 + $0x68] sm:$0xff]
    %v57 = vld [vmem:[#allocation5 + $0x70] sm:$0xff]
    %v58 = vld [vmem:[#allocation5 + $0x78] sm:$0xff]
    %v59 = vld [vmem:[#allocation5 + $0x80] sm:$0xff]
    %v60 = vld [vmem:[#allocation5 + $0x88] sm:$0xff]
    %v61 = vld [vmem:[#allocation5 + $0x90] sm:$0xff]
    %v62 = vld [vmem:[#allocation5 + $0x98] sm:$0xff]
    %v63 = vld [vmem:[#allocation5 + $0xa0] sm:$0xff]
    %v64 = vld [vmem:[#allocation5 + $0xa8] sm:$0xff]
    %v65 = vld [vmem:[#allocation5 + $0xb0] sm:$0xff]
    %v66 = vld [vmem:[#allocation5 + $0xb8] sm:$0xff]
    %v67 = vld [vmem:[#allocation5 + $0xc0] sm:$0xff]
    %v68 = vld [vmem:[#allocation5 + $0xc8] sm:$0xff]
    %v69 = vld [vmem:[#allocation5 + $0xd0] sm:$0xff]
    %v70 = vld [vmem:[#allocation5 + $0xd8] sm:$0xff]
    %v71 = vld [vmem:[#allocation5 + $0xe0] sm:$0xff]
    %v72 = vld [vmem:[#allocation5 + $0xe8] sm:$0xff]
    %v73 = vld [vmem:[#allocation5 + $0xf0] sm:$0xff]
    %v74 = vld [vmem:[#allocation5 + $0xf8] sm:$0xff]
    %v75 = vld [vmem:[#allocation5 + $0x100] sm:$0xff]
    %v76 = vld [vmem:[#allocation5 + $0x108] sm:$0xff]
    %v77 = vld [vmem:[#allocation5 + $0x110] sm:$0xff]
    %v78 = vperm.slane %v77, 0
    %vm79 = vcmask 130048
    %v81 = vsel %vm79, %v42, 0
    %83 = vmatpush.msra.mxu0 0.0
    %84 = vmatpush.msra.mxu0 0.0
    %85 = vmatpush.msra.mxu0 0.0
    %86 = vmatpush.msra.mxu0 0.0
    %87 = vmatpush.msra.mxu0 0.0
    %88 = vmatpush.msra.mxu0 0.0
    %89 = vmatpush.msra.mxu0 0.0
    %90 = vmatpush.msra.mxu0 0.0
    %91 = vmatpush.msra.mxu0 0.0
    %92 = vmatpush.msra.mxu0 0.0
    %93 = vmatpush.msra.mxu0 0.0
    %94 = vmatpush.msra.mxu0 0.0
    %95 = vmatpush.msra.mxu0 0.0
    %96 = vmatpush.msra.mxu0 0.0
    %97 = vmatpush.msra.mxu0 %v44
    %98 = vmatpush.msra.mxu0 %v43
    %99 = vmatmul.f32.gmra.mxu0 %v81
    %v100 = vpop.f32.mrf.mxu0
    %v101 = vadd.f32 %v78, %v100
    %102 = vdwg.mxu0
    %v103 = vmax.f32 %v101, 0.0
    %v104 = vrot.slane %v103, 4
    %v105 = vadd.f32 %v103, %v104
    %v106 = vrot.slane %v105, 2
    %v107 = vadd.f32 %v105, %v106
    %v108 = vrot.slane %v107, 1
    %v109 = vadd.f32 %v107, %v108
    %v110 = vmul.f32 %v109, 0.125
    %v111 = vsub.f32 %v103, %v110
    %v112 = vmul.f32 %v111, %v111
    %v113 = vrot.slane %v112, 4
    %v114 = vadd.f32 %v112, %v113
    %v115 = vrot.slane %v114, 2
    %v116 = vadd.f32 %v114, %v115
    %v117 = vrot.slane %v116, 1
    %v118 = vadd.f32 %v116, %v117
    %v119 = vmul.f32 %v118, 0.125
    %v120 = vadd.f32 %v119, 1e-05
    %v121 = vrsqrt.pop %v120
    %v122 = vmul.f32 %v121, %v120
    %v123 = vmul.f32 %v122, %v121
    %v124 = vmul.f32 0.5, %v123
    %v125 = vsub.f32 1.5, %v124
    %v126 = vmul.f32 %v121, %v125
    %vm127 = vweird.f32 %v120
    %vm128 = vweird.f32 %v121
    %vm129 = vmor %vm127, %vm128
    %v130 = vsel %vm129, %v121, %v126
    %v131 = vmul.f32 %v77, %v130
    %v132 = vperm.slane %v131, 1
    %v133 = vmul.f32 %v111, %v132
    %v134 = vperm.slane %v77, 2
    %v135 = vadd.f32 %v133, %v134
    %v136 = vperm.slane %v77, 3
    %137 = vmatpush.msra.mxu0 %v60
    %138 = vmatpush.msra.mxu0 %v59
    %139 = vmatpush.msra.mxu0 %v58
    %140 = vmatpush.msra.mxu0 %v57
    %141 = vmatpush.msra.mxu0 %v56
    %142 = vmatpush.msra.mxu0 %v55
    %143 = vmatpush.msra.mxu0 %v54
    %144 = vmatpush.msra.mxu0 %v53
    %145 = vmatpush.msra.mxu0 %v52
    %146 = vmatpush.msra.mxu0 %v51
    %147 = vmatpush.msra.mxu0 %v50
    %148 = vmatpush.msra.mxu0 %v49
    %149 = vmatpush.msra.mxu0 %v48
    %150 = vmatpush.msra.mxu0 %v47
    %151 = vmatpush.msra.mxu0 %v46
    %152 = vmatpush.msra.mxu0 %v45
    %153 = vmatmul.f32.gmra.mxu0 %v135
    %v154 = vpop.f32.mrf.mxu0
    %v155 = vadd.f32 %v136, %v154
    %156 = vdwg.mxu0
    %v157 = vmax.f32 %v155, 0.0
    %v158 = vperm.slane %v77, 4
    %159 = vmatpush.msra.mxu0 %v76
    %160 = vmatpush.msra.mxu0 %v75
    %161 = vmatpush.msra.mxu0 %v74
    %162 = vmatpush.msra.mxu0 %v73
    %163 = vmatpush.msra.mxu0 %v72
    %164 = vmatpush.msra.mxu0 %v71
    %165 = vmatpush.msra.mxu0 %v70
    %166 = vmatpush.msra.mxu0 %v69
    %167 = vmatpush.msra.mxu0 %v68
    %168 = vmatpush.msra.mxu0 %v67
    %169 = vmatpush.msra.mxu0 %v66
    %170 = vmatpush.msra.mxu0 %v65
    %171 = vmatpush.msra.mxu0 %v64
    %172 = vmatpush.msra.mxu0 %v63
    %173 = vmatpush.msra.mxu0 %v62
    %174 = vmatpush.msra.mxu0 %v61
    %175 = vmatmul.f32.gmra.mxu0 %v157
    %v176 = vpop.f32.mrf.mxu0
    %v177 = vadd.f32 %v158, %v176
    %178 = vdwg.mxu0
    %v179 = vtanh.pop %v177
    %180 = vst [vmem:[#allocation7] sm:$0xff] %v179
    // Predicated region
    $region18: #{actor_network_forward.1} parent=1 // pred_check
      _
    $region19: #{actor_network_forward.1} parent=1 // pred_check_branch
      %182 = sbr.rel (0) target = $region21
    $region20: #{actor_network_forward.1} parent=1 // pred_region
      %184 = vsyncadd [#allocation4], 0
      %s186 = sshll.u32 [#allocation7], 4
      %s187 = int_to_ptr.vmem [resolvable:$true] %s186
      %s188 = sshll.u32 %s2, 4
      %s189 = int_to_ptr.hbm [resolvable:$true] %s188
      %191 = dma.vmem_to_hbm [thread:$0]  %s187, 128, %s189, [#allocation4]
    $region21: #{actor_network_forward.1} parent=1 // pred_fallthru
      _
    // Predicated region
    $region22: #{actor_network_forward.1} parent=1 // pred_check
      _
    $region23: #{actor_network_forward.1} parent=1 // pred_check_branch
      %193 = sbr.rel (0) target = $region25
    $region24: #{actor_network_forward.1} parent=1 // pred_region
      %195 = dma.done [#allocation4], 128
    $region25: #{actor_network_forward.1} parent=1 // pred_fallthru
      _
    %196 = vsyncpa [#allocation3], 1
    %197 = vsyncpa [#allocation6], 1
    %198 = vsyncpa [#allocation4], 1

</llo_original>
